<compile_context>
chip_gen: v6e
topology: v6e:2x2x1
jax: 0.10.0
libtpu: 0.0.40
codegen_flags: <defaults>
</compile_context>

<pallas_src>
import functools

import jax
import jax.numpy as jnp
from jax.experimental import pallas as pl
from jax.experimental.pallas import tpu as pltpu


# ----------------------------------------------------------------------------
# One-time (model-load) parameter preprocessing — NOT part of the per-call path
# ----------------------------------------------------------------------------
def _permute_ifgo_to_ifog(w, hidden_dim):
    """Reorder the 4H gate axis (last axis) from [i,f,g,o] to [i,f,o,g]."""
    H = hidden_dim
    return jnp.concatenate(
        [w[..., :2 * H], w[..., 3 * H:4 * H], w[..., 2 * H:3 * H]], axis=-1)


def prepare_goal_encoder_params(w_emb, b_emb, w_ih, w_hh, b_ih, b_hh):
    """Pack all GoalEncoder parameters into a single (8 + D + H, 4H) f32 slab.

    Inputs use the PyTorch conventions (pre-transposed):
      w_emb = inputEmbedding.weight.T  (2, D),  b_emb = bias (1, D)
      w_ih  = lstm.weight_ih.T (D, 4H), w_hh = lstm.weight_hh.T (H, 4H)
      b_ih, b_hh = lstm biases (1, 4H), gate order [i, f, g, o].

    Slab layout (rows, 4H lanes), all offsets 8-sublane aligned for the
    large blocks:
      row 0          : fused bias (b_ih + b_hh), gate order [i, f, o, g]
      row 1          : w_emb[0] (x coefficient), padded to 4H lanes
      row 2          : w_emb[1] (y coefficient), padded
      row 3          : b_emb, padded
      rows 4..7      : zero padding
      rows 8..8+D    : W_ih, gate order [i, f, o, g]
      rows 8+D..8+D+H: W_hh, gate order [i, f, o, g]
    """
    D = w_ih.shape[0]
    H = w_hh.shape[0]
    lanes = 4 * H
    assert w_emb.shape == (2, D) and lanes >= D

    w_ih_p = _permute_ifgo_to_ifog(w_ih, H)                       # (D, 4H)
    w_hh_p = _permute_ifgo_to_ifog(w_hh, H)                       # (H, 4H)
    bias_p = _permute_ifgo_to_ifog(jnp.reshape(b_ih + b_hh, (1, lanes)), H)

    def _pad_row(v):
        v = jnp.reshape(v, (1, -1)).astype(jnp.float32)
        return jnp.pad(v, ((0, 0), (0, lanes - v.shape[1])))

    misc = jnp.concatenate(
        [bias_p.astype(jnp.float32),
         _pad_row(w_emb[0]), _pad_row(w_emb[1]), _pad_row(b_emb),
         jnp.zeros((4, lanes), jnp.float32)], axis=0)             # (8, 4H)

    slab = jnp.concatenate(
        [misc, w_ih_p.astype(jnp.float32), w_hh_p.astype(jnp.float32)], axis=0)
    return slab                                                   # (8+D+H, 4H)


# ----------------------------------------------------------------------------
# Kernel
# ----------------------------------------------------------------------------
def _make_goal_encoder_kernel(obs_len: int, batch: int, input_dim: int,
                              hidden_dim: int):
    B, D, H = batch, input_dim, hidden_dim

    def kernel(obs_ref,     # (obs_len*B, 2) f32  flattened trajectory
               hc0_ref,     # (2B, H)        f32  rows 0:B = h0, B:2B = c0
               params_ref,  # (8+D+H, 4H)    f32  packed parameter slab
               out_ref):    # (B, H)         f32  final hidden state
        # ---- Static views into the packed parameter slab (single DMA) ------
        bias = params_ref[0:1, :]                                  # (1, 4H)
        w_e0 = params_ref[1:2, 0:D]                                # (1, D)
        w_e1 = params_ref[2:3, 0:D]                                # (1, D)
        b_e = params_ref[3:4, 0:D]                                 # (1, D)
        w_ih = params_ref[8:8 + D, :].astype(jnp.bfloat16)         # (D, 4H)
        w_hh = params_ref[8 + D:8 + D + H, :].astype(jnp.bfloat16)  # (H, 4H)

        # ---- Hoisted, non-recurrent work (runs once) ------------------------
        obs = obs_ref[...]                                         # (T*B, 2)
        # Linear(2, D) + ReLU as two VPU broadcast multiply-adds — avoids a
        # K=2 MXU matmul that would pay full systolic fill for no work.
        emb = jnp.maximum(obs[:, 0:1] * w_e0 + obs[:, 1:2] * w_e1 + b_e, 0.0)
        # Input-to-hidden projection + fused biases, once for all timesteps,
        # bf16 operands with f32 accumulation.
        x_gates = (jnp.dot(emb.astype(jnp.bfloat16), w_ih,
                           preferred_element_type=jnp.float32)
                   + bias)                                         # (T*B, 4H)

        h = hc0_ref[0:B, :]                                        # f32 state
        c = hc0_ref[B:2 * B, :]

        # ---- Latency-critical recurrence (fully unrolled, obs_len static) --
        for t in range(obs_len):
            gates = (x_gates[t * B:(t + 1) * B, :]
                     + jnp.dot(h.astype(jnp.bfloat16), w_hh,
                               preferred_element_type=jnp.float32))
            # Permuted gate order [i, f, o, g]: one sigmoid over 3H columns.
            sig = jax.nn.sigmoid(gates[:, :3 * H])
            g_g = jnp.tanh(gates[:, 3 * H:])
            i_g = sig[:, 0 * H:1 * H]
            f_g = sig[:, 1 * H:2 * H]
            o_g = sig[:, 2 * H:3 * H]
            c = f_g * c + i_g * g_g
            h = o_g * jnp.tanh(c)

        out_ref[...] = h          # only store in the whole kernel

    return kernel


# ----------------------------------------------------------------------------
# Per-call wrapper (jitted): layout plumbing only, no parameter reshuffling
# ----------------------------------------------------------------------------
@functools.partial(jax.jit, static_argnames=("obs_len",))
def goal_encoder_forward(obs_goal, h0, c0, packed_params, *, obs_len):
    """Pallas implementation of GoalEncoder.forward.

    obs_goal: (T, B, 2); h0/c0: (B, H) initial states (the module's
    init_hidden randn); packed_params from prepare_goal_encoder_params.
    Returns the final hidden state (B, H).
    """
    T, B, _ = obs_goal.shape
    assert obs_len <= T, f"obs_len ({obs_len}) must be <= seq length ({T})"
    H = h0.shape[1]
    lanes = packed_params.shape[1]
    assert lanes == 4 * H
    D = packed_params.shape[0] - 8 - H
    assert D > 0

    # Pad batch to a multiple of 8 so every per-step gate slice is a
    # whole-sublane-tile static view (correctness is unaffected).
    Bp = ((B + 7) // 8) * 8
    obs_used = obs_goal[:obs_len]
    if Bp != B:
        obs_used = jnp.pad(obs_used, ((0, 0), (0, Bp - B), (0, 0)))
        h0 = jnp.pad(h0, ((0, Bp - B), (0, 0)))
        c0 = jnp.pad(c0, ((0, Bp - B), (0, 0)))

    # Flatten consumed timesteps to (obs_len*Bp, 2); stack h0/c0 into one
    # operand.  3 kernel inputs total -> 3 DMA descriptors.
    obs_flat = obs_used.reshape(obs_len * Bp, 2)
    hc0 = jnp.concatenate([h0, c0], axis=0)                        # (2*Bp, H)

    kernel = _make_goal_encoder_kernel(obs_len, Bp, D, H)
    vmem = pl.BlockSpec(memory_space=pltpu.MemorySpace.VMEM)
    out = pl.pallas_call(
        kernel,
        out_shape=jax.ShapeDtypeStruct((Bp, H), jnp.float32),
        in_specs=[vmem, vmem, vmem],
        out_specs=vmem,
    )(obs_flat, hc0, packed_params)
    return out[:B] if Bp != B else out


# ----------------------------------------------------------------------------
# Pure-JAX reference mirroring the PyTorch forward, for verification
# ----------------------------------------------------------------------------
def _reference_forward(obs_goal, w_emb, b_emb, w_ih, w_hh, b_ih, b_hh,
                       h0, c0, obs_len):
    H = w_hh.shape[0]
    h, c = h0, c0
    for t in range(obs_len):
        x_t = obs_goal[t]
        emb = jnp.maximum(x_t @ w_emb + b_emb, 0.0)
        gates = emb @ w_ih + h @ w_hh + b_ih + b_hh
        i_g = jax.nn.sigmoid(gates[:, 0 * H:1 * H])
        f_g = jax.nn.sigmoid(gates[:, 1 * H:2 * H])
        g_g = jnp.tanh(gates[:, 2 * H:3 * H])
        o_g = jax.nn.sigmoid(gates[:, 3 * H:4 * H])
        c = f_g * c + i_g * g_g
        h = o_g * jnp.tanh(c)
    return h


if __name__ == "__main__":
    # Small, module-consistent shapes (B = 8 = one full sublane tile).
    obs_len = 8           # timesteps actually consumed by the LSTM
    T = 10                # total sequence length (>= obs_len, extras ignored)
    B = 8                 # batch
    D = 32                # goal_encoder_input_dim
    H = 32                # goal_encoder_hidden_dim

    key = jax.random.PRNGKey(0)
    (k_obs, k_we, k_be, k_wih, k_whh, k_bih, k_bhh,
     k_h0, k_c0) = jax.random.split(key, 9)

    # Input trajectory (T, B, 2)
    obs_goal = jax.random.normal(k_obs, (T, B, 2), dtype=jnp.float32)

    # Deterministic "checkpoint": inputEmbedding = Linear(2, D)
    w_emb = jax.random.normal(k_we, (2, D), dtype=jnp.float32) * 0.3   # weight.T
    b_emb = jax.random.normal(k_be, (1, D), dtype=jnp.float32) * 0.1

    # LSTMCell(D, H): weight_ih (4H, D) -> passed transposed. Gate order [i,f,g,o].
    w_ih = jax.random.normal(k_wih, (D, 4 * H), dtype=jnp.float32) * 0.1
    w_hh = jax.random.normal(k_whh, (H, 4 * H), dtype=jnp.float32) * 0.1
    b_ih = jax.random.normal(k_bih, (1, 4 * H), dtype=jnp.float32) * 0.05
    b_hh = jax.random.normal(k_bhh, (1, 4 * H), dtype=jnp.float32) * 0.05

    # init_hidden(): torch.randn(batch, H) for both h and c -> explicit here
    # so the kernel is deterministic and verifiable against the reference.
    h0 = jax.random.normal(k_h0, (B, H), dtype=jnp.float32)
    c0 = jax.random.normal(k_c0, (B, H), dtype=jnp.float32)

    # One-time, model-load-time parameter preprocessing (outside the jitted
    # per-call path): gate permutation + bias fusion + single-slab packing.
    packed_params = jax.block_until_ready(
        prepare_goal_encoder_params(w_emb, b_emb, w_ih, w_hh, b_ih, b_hh))

    out = goal_encoder_forward(obs_goal, h0, c0, packed_params,
                               obs_len=obs_len)
    out = jax.block_until_ready(out)

    ref = _reference_forward(obs_goal, w_emb, b_emb, w_ih, w_hh, b_ih, b_hh,
                             h0, c0, obs_len)
    assert out.shape == (B, H)
    # bf16 MXU operands (f32 accumulation) -> loosened tolerance vs f32 ref.
    assert jnp.allclose(out, ref, atol=5e-2, rtol=5e-2), (
        f"mismatch vs reference; max abs err = {jnp.max(jnp.abs(out - ref))}")

    print("KERNEL_OK")
</pallas_src>

<mosaic_0001>
module attributes {stable_mosaic.version = 11 : i64} {
  func.func @kernel(%arg0: memref<64x2xf32, #tpu.memory_space<vmem>>, %arg1: memref<16x32xf32, #tpu.memory_space<vmem>>, %arg2: memref<72x128xf32, #tpu.memory_space<vmem>>, %arg3: memref<8x32xf32, #tpu.memory_space<vmem>>) attributes {dimension_semantics = [], scalar_prefetch = 0 : i64, scratch_operands = 0 : i64, tpu.core_type = #tpu.core_type<tc>} {
    %c0 = arith.constant 0 : index
    %c0_0 = arith.constant 0 : index
    %0 = vector.load %arg2[%c0, %c0_0] : memref<72x128xf32, #tpu.memory_space<vmem>>, vector<1x128xf32>
    %c1 = arith.constant 1 : index
    %c0_1 = arith.constant 0 : index
    %1 = vector.load %arg2[%c1, %c0_1] : memref<72x128xf32, #tpu.memory_space<vmem>>, vector<1x32xf32>
    %c2 = arith.constant 2 : index
    %c0_2 = arith.constant 0 : index
    %2 = vector.load %arg2[%c2, %c0_2] : memref<72x128xf32, #tpu.memory_space<vmem>>, vector<1x32xf32>
    %c3 = arith.constant 3 : index
    %c0_3 = arith.constant 0 : index
    %3 = vector.load %arg2[%c3, %c0_3] : memref<72x128xf32, #tpu.memory_space<vmem>>, vector<1x32xf32>
    %c8 = arith.constant 8 : index
    %c0_4 = arith.constant 0 : index
    %4 = vector.load %arg2[%c8, %c0_4] : memref<72x128xf32, #tpu.memory_space<vmem>>, vector<32x128xf32>
    %5 = arith.truncf %4 : vector<32x128xf32> to vector<32x128xbf16>
    %c40 = arith.constant 40 : index
    %c0_5 = arith.constant 0 : index
    %6 = vector.load %arg2[%c40, %c0_5] : memref<72x128xf32, #tpu.memory_space<vmem>>, vector<32x128xf32>
    %7 = arith.truncf %6 : vector<32x128xf32> to vector<32x128xbf16>
    %c0_6 = arith.constant 0 : index
    %c0_7 = arith.constant 0 : index
    %8 = vector.load %arg0[%c0_6, %c0_7] : memref<64x2xf32, #tpu.memory_space<vmem>>, vector<64x2xf32>
    %9 = vector.extract_strided_slice %8 {offsets = [0, 0], sizes = [64, 1], strides = [1, 1]} : vector<64x2xf32> to vector<64x1xf32>
    %10 = vector.broadcast %9 : vector<64x1xf32> to vector<64x32xf32>
    %11 = vector.broadcast %1 : vector<1x32xf32> to vector<64x32xf32>
    %12 = arith.mulf %10, %11 : vector<64x32xf32>
    %13 = vector.extract_strided_slice %8 {offsets = [0, 1], sizes = [64, 1], strides = [1, 1]} : vector<64x2xf32> to vector<64x1xf32>
    %14 = vector.broadcast %13 : vector<64x1xf32> to vector<64x32xf32>
    %15 = vector.broadcast %2 : vector<1x32xf32> to vector<64x32xf32>
    %16 = arith.mulf %14, %15 : vector<64x32xf32>
    %17 = arith.addf %12, %16 : vector<64x32xf32>
    %18 = vector.broadcast %3 : vector<1x32xf32> to vector<64x32xf32>
    %19 = arith.addf %17, %18 : vector<64x32xf32>
    %cst = arith.constant 0.000000e+00 : f32
    %20 = vector.broadcast %cst : f32 to vector<64x32xf32>
    %21 = arith.maximumf %19, %20 : vector<64x32xf32>
    %22 = arith.truncf %21 : vector<64x32xf32> to vector<64x32xbf16>
    %cst_8 = arith.constant dense<0.000000e+00> : vector<64x128xf32>
    %23 = tpu.matmul %22, %5, %cst_8 {dimension_numbers = #tpu.dot_dimension_numbers<[1], [0], [0], [1], [0, 0, 1, 1], [], []>} : vector<64x32xbf16>, vector<32x128xbf16>, vector<64x128xf32> -> vector<64x128xf32>
    %24 = vector.broadcast %0 : vector<1x128xf32> to vector<64x128xf32>
    %25 = arith.addf %23, %24 : vector<64x128xf32>
    %c0_9 = arith.constant 0 : index
    %c0_10 = arith.constant 0 : index
    %26 = vector.load %arg1[%c0_9, %c0_10] : memref<16x32xf32, #tpu.memory_space<vmem>>, vector<8x32xf32>
    %c8_11 = arith.constant 8 : index
    %c0_12 = arith.constant 0 : index
    %27 = vector.load %arg1[%c8_11, %c0_12] : memref<16x32xf32, #tpu.memory_space<vmem>>, vector<8x32xf32>
    %28 = vector.extract_strided_slice %25 {offsets = [0, 0], sizes = [8, 128], strides = [1, 1]} : vector<64x128xf32> to vector<8x128xf32>
    %29 = arith.truncf %26 : vector<8x32xf32> to vector<8x32xbf16>
    %cst_13 = arith.constant dense<0.000000e+00> : vector<8x128xf32>
    %30 = tpu.matmul %29, %7, %cst_13 {dimension_numbers = #tpu.dot_dimension_numbers<[1], [0], [0], [1], [0, 0, 1, 1], [], []>} : vector<8x32xbf16>, vector<32x128xbf16>, vector<8x128xf32> -> vector<8x128xf32>
    %31 = arith.addf %28, %30 : vector<8x128xf32>
    %32 = vector.extract_strided_slice %31 {offsets = [0, 0], sizes = [8, 96], strides = [1, 1]} : vector<8x128xf32> to vector<8x96xf32>
    %33 = arith.negf %32 : vector<8x96xf32>
    %34 = math.exp %33 : vector<8x96xf32>
    %cst_14 = arith.constant 1.000000e+00 : f32
    %35 = vector.broadcast %cst_14 : f32 to vector<8x96xf32>
    %36 = arith.addf %35, %34 : vector<8x96xf32>
    %37 = arith.divf %35, %36 : vector<8x96xf32>
    %38 = vector.extract_strided_slice %31 {offsets = [0, 96], sizes = [8, 32], strides = [1, 1]} : vector<8x128xf32> to vector<8x32xf32>
    %39 = math.tanh %38 : vector<8x32xf32>
    %40 = vector.extract_strided_slice %37 {offsets = [0, 0], sizes = [8, 32], strides = [1, 1]} : vector<8x96xf32> to vector<8x32xf32>
    %41 = vector.extract_strided_slice %37 {offsets = [0, 32], sizes = [8, 32], strides = [1, 1]} : vector<8x96xf32> to vector<8x32xf32>
    %42 = vector.extract_strided_slice %37 {offsets = [0, 64], sizes = [8, 32], strides = [1, 1]} : vector<8x96xf32> to vector<8x32xf32>
    %43 = arith.mulf %41, %27 : vector<8x32xf32>
    %44 = arith.mulf %40, %39 : vector<8x32xf32>
    %45 = arith.addf %43, %44 : vector<8x32xf32>
    %46 = math.tanh %45 : vector<8x32xf32>
    %47 = arith.mulf %42, %46 : vector<8x32xf32>
    %48 = vector.extract_strided_slice %25 {offsets = [8, 0], sizes = [8, 128], strides = [1, 1]} : vector<64x128xf32> to vector<8x128xf32>
    %49 = arith.truncf %47 : vector<8x32xf32> to vector<8x32xbf16>
    %cst_15 = arith.constant dense<0.000000e+00> : vector<8x128xf32>
    %50 = tpu.matmul %49, %7, %cst_15 {dimension_numbers = #tpu.dot_dimension_numbers<[1], [0], [0], [1], [0, 0, 1, 1], [], []>} : vector<8x32xbf16>, vector<32x128xbf16>, vector<8x128xf32> -> vector<8x128xf32>
    %51 = arith.addf %48, %50 : vector<8x128xf32>
    %52 = vector.extract_strided_slice %51 {offsets = [0, 0], sizes = [8, 96], strides = [1, 1]} : vector<8x128xf32> to vector<8x96xf32>
    %53 = arith.negf %52 : vector<8x96xf32>
    %54 = math.exp %53 : vector<8x96xf32>
    %cst_16 = arith.constant 1.000000e+00 : f32
    %55 = vector.broadcast %cst_16 : f32 to vector<8x96xf32>
    %56 = arith.addf %55, %54 : vector<8x96xf32>
    %57 = arith.divf %55, %56 : vector<8x96xf32>
    %58 = vector.extract_strided_slice %51 {offsets = [0, 96], sizes = [8, 32], strides = [1, 1]} : vector<8x128xf32> to vector<8x32xf32>
    %59 = math.tanh %58 : vector<8x32xf32>
    %60 = vector.extract_strided_slice %57 {offsets = [0, 0], sizes = [8, 32], strides = [1, 1]} : vector<8x96xf32> to vector<8x32xf32>
    %61 = vector.extract_strided_slice %57 {offsets = [0, 32], sizes = [8, 32], strides = [1, 1]} : vector<8x96xf32> to vector<8x32xf32>
    %62 = vector.extract_strided_slice %57 {offsets = [0, 64], sizes = [8, 32], strides = [1, 1]} : vector<8x96xf32> to vector<8x32xf32>
    %63 = arith.mulf %61, %45 : vector<8x32xf32>
    %64 = arith.mulf %60, %59 : vector<8x32xf32>
    %65 = arith.addf %63, %64 : vector<8x32xf32>
    %66 = math.tanh %65 : vector<8x32xf32>
    %67 = arith.mulf %62, %66 : vector<8x32xf32>
    %68 = vector.extract_strided_slice %25 {offsets = [16, 0], sizes = [8, 128], strides = [1, 1]} : vector<64x128xf32> to vector<8x128xf32>
    %69 = arith.truncf %67 : vector<8x32xf32> to vector<8x32xbf16>
    %cst_17 = arith.constant dense<0.000000e+00> : vector<8x128xf32>
    %70 = tpu.matmul %69, %7, %cst_17 {dimension_numbers = #tpu.dot_dimension_numbers<[1], [0], [0], [1], [0, 0, 1, 1], [], []>} : vector<8x32xbf16>, vector<32x128xbf16>, vector<8x128xf32> -> vector<8x128xf32>
    %71 = arith.addf %68, %70 : vector<8x128xf32>
    %72 = vector.extract_strided_slice %71 {offsets = [0, 0], sizes = [8, 96], strides = [1, 1]} : vector<8x128xf32> to vector<8x96xf32>
    %73 = arith.negf %72 : vector<8x96xf32>
    %74 = math.exp %73 : vector<8x96xf32>
    %cst_18 = arith.constant 1.000000e+00 : f32
    %75 = vector.broadcast %cst_18 : f32 to vector<8x96xf32>
    %76 = arith.addf %75, %74 : vector<8x96xf32>
    %77 = arith.divf %75, %76 : vector<8x96xf32>
    %78 = vector.extract_strided_slice %71 {offsets = [0, 96], sizes = [8, 32], strides = [1, 1]} : vector<8x128xf32> to vector<8x32xf32>
    %79 = math.tanh %78 : vector<8x32xf32>
    %80 = vector.extract_strided_slice %77 {offsets = [0, 0], sizes = [8, 32], strides = [1, 1]} : vector<8x96xf32> to vector<8x32xf32>
    %81 = vector.extract_strided_slice %77 {offsets = [0, 32], sizes = [8, 32], strides = [1, 1]} : vector<8x96xf32> to vector<8x32xf32>
    %82 = vector.extract_strided_slice %77 {offsets = [0, 64], sizes = [8, 32], strides = [1, 1]} : vector<8x96xf32> to vector<8x32xf32>
    %83 = arith.mulf %81, %65 : vector<8x32xf32>
    %84 = arith.mulf %80, %79 : vector<8x32xf32>
    %85 = arith.addf %83, %84 : vector<8x32xf32>
    %86 = math.tanh %85 : vector<8x32xf32>
    %87 = arith.mulf %82, %86 : vector<8x32xf32>
    %88 = vector.extract_strided_slice %25 {offsets = [24, 0], sizes = [8, 128], strides = [1, 1]} : vector<64x128xf32> to vector<8x128xf32>
    %89 = arith.truncf %87 : vector<8x32xf32> to vector<8x32xbf16>
    %cst_19 = arith.constant dense<0.000000e+00> : vector<8x128xf32>
    %90 = tpu.matmul %89, %7, %cst_19 {dimension_numbers = #tpu.dot_dimension_numbers<[1], [0], [0], [1], [0, 0, 1, 1], [], []>} : vector<8x32xbf16>, vector<32x128xbf16>, vector<8x128xf32> -> vector<8x128xf32>
    %91 = arith.addf %88, %90 : vector<8x128xf32>
    %92 = vector.extract_strided_slice %91 {offsets = [0, 0], sizes = [8, 96], strides = [1, 1]} : vector<8x128xf32> to vector<8x96xf32>
    %93 = arith.negf %92 : vector<8x96xf32>
    %94 = math.exp %93 : vector<8x96xf32>
    %cst_20 = arith.constant 1.000000e+00 : f32
    %95 = vector.broadcast %cst_20 : f32 to vector<8x96xf32>
    %96 = arith.addf %95, %94 : vector<8x96xf32>
    %97 = arith.divf %95, %96 : vector<8x96xf32>
    %98 = vector.extract_strided_slice %91 {offsets = [0, 96], sizes = [8, 32], strides = [1, 1]} : vector<8x128xf32> to vector<8x32xf32>
    %99 = math.tanh %98 : vector<8x32xf32>
    %100 = vector.extract_strided_slice %97 {offsets = [0, 0], sizes = [8, 32], strides = [1, 1]} : vector<8x96xf32> to vector<8x32xf32>
    %101 = vector.extract_strided_slice %97 {offsets = [0, 32], sizes = [8, 32], strides = [1, 1]} : vector<8x96xf32> to vector<8x32xf32>
    %102 = vector.extract_strided_slice %97 {offsets = [0, 64], sizes = [8, 32], strides = [1, 1]} : vector<8x96xf32> to vector<8x32xf32>
    %103 = arith.mulf %101, %85 : vector<8x32xf32>
    %104 = arith.mulf %100, %99 : vector<8x32xf32>
    %105 = arith.addf %103, %104 : vector<8x32xf32>
    %106 = math.tanh %105 : vector<8x32xf32>
    %107 = arith.mulf %102, %106 : vector<8x32xf32>
    %108 = vector.extract_strided_slice %25 {offsets = [32, 0], sizes = [8, 128], strides = [1, 1]} : vector<64x128xf32> to vector<8x128xf32>
    %109 = arith.truncf %107 : vector<8x32xf32> to vector<8x32xbf16>
    %cst_21 = arith.constant dense<0.000000e+00> : vector<8x128xf32>
    %110 = tpu.matmul %109, %7, %cst_21 {dimension_numbers = #tpu.dot_dimension_numbers<[1], [0], [0], [1], [0, 0, 1, 1], [], []>} : vector<8x32xbf16>, vector<32x128xbf16>, vector<8x128xf32> -> vector<8x128xf32>
    %111 = arith.addf %108, %110 : vector<8x128xf32>
    %112 = vector.extract_strided_slice %111 {offsets = [0, 0], sizes = [8, 96], strides = [1, 1]} : vector<8x128xf32> to vector<8x96xf32>
    %113 = arith.negf %112 : vector<8x96xf32>
    %114 = math.exp %113 : vector<8x96xf32>
    %cst_22 = arith.constant 1.000000e+00 : f32
    %115 = vector.broadcast %cst_22 : f32 to vector<8x96xf32>
    %116 = arith.addf %115, %114 : vector<8x96xf32>
    %117 = arith.divf %115, %116 : vector<8x96xf32>
    %118 = vector.extract_strided_slice %111 {offsets = [0, 96], sizes = [8, 32], strides = [1, 1]} : vector<8x128xf32> to vector<8x32xf32>
    %119 = math.tanh %118 : vector<8x32xf32>
    %120 = vector.extract_strided_slice %117 {offsets = [0, 0], sizes = [8, 32], strides = [1, 1]} : vector<8x96xf32> to vector<8x32xf32>
    %121 = vector.extract_strided_slice %117 {offsets = [0, 32], sizes = [8, 32], strides = [1, 1]} : vector<8x96xf32> to vector<8x32xf32>
    %122 = vector.extract_strided_slice %117 {offsets = [0, 64], sizes = [8, 32], strides = [1, 1]} : vector<8x96xf32> to vector<8x32xf32>
    %123 = arith.mulf %121, %105 : vector<8x32xf32>
    %124 = arith.mulf %120, %119 : vector<8x32xf32>
    %125 = arith.addf %123, %124 : vector<8x32xf32>
    %126 = math.tanh %125 : vector<8x32xf32>
    %127 = arith.mulf %122, %126 : vector<8x32xf32>
    %128 = vector.extract_strided_slice %25 {offsets = [40, 0], sizes = [8, 128], strides = [1, 1]} : vector<64x128xf32> to vector<8x128xf32>
    %129 = arith.truncf %127 : vector<8x32xf32> to vector<8x32xbf16>
    %cst_23 = arith.constant dense<0.000000e+00> : vector<8x128xf32>
    %130 = tpu.matmul %129, %7, %cst_23 {dimension_numbers = #tpu.dot_dimension_numbers<[1], [0], [0], [1], [0, 0, 1, 1], [], []>} : vector<8x32xbf16>, vector<32x128xbf16>, vector<8x128xf32> -> vector<8x128xf32>
    %131 = arith.addf %128, %130 : vector<8x128xf32>
    %132 = vector.extract_strided_slice %131 {offsets = [0, 0], sizes = [8, 96], strides = [1, 1]} : vector<8x128xf32> to vector<8x96xf32>
    %133 = arith.negf %132 : vector<8x96xf32>
    %134 = math.exp %133 : vector<8x96xf32>
    %cst_24 = arith.constant 1.000000e+00 : f32
    %135 = vector.broadcast %cst_24 : f32 to vector<8x96xf32>
    %136 = arith.addf %135, %134 : vector<8x96xf32>
    %137 = arith.divf %135, %136 : vector<8x96xf32>
    %138 = vector.extract_strided_slice %131 {offsets = [0, 96], sizes = [8, 32], strides = [1, 1]} : vector<8x128xf32> to vector<8x32xf32>
    %139 = math.tanh %138 : vector<8x32xf32>
    %140 = vector.extract_strided_slice %137 {offsets = [0, 0], sizes = [8, 32], strides = [1, 1]} : vector<8x96xf32> to vector<8x32xf32>
    %141 = vector.extract_strided_slice %137 {offsets = [0, 32], sizes = [8, 32], strides = [1, 1]} : vector<8x96xf32> to vector<8x32xf32>
    %142 = vector.extract_strided_slice %137 {offsets = [0, 64], sizes = [8, 32], strides = [1, 1]} : vector<8x96xf32> to vector<8x32xf32>
    %143 = arith.mulf %141, %125 : vector<8x32xf32>
    %144 = arith.mulf %140, %139 : vector<8x32xf32>
    %145 = arith.addf %143, %144 : vector<8x32xf32>
    %146 = math.tanh %145 : vector<8x32xf32>
    %147 = arith.mulf %142, %146 : vector<8x32xf32>
    %148 = vector.extract_strided_slice %25 {offsets = [48, 0], sizes = [8, 128], strides = [1, 1]} : vector<64x128xf32> to vector<8x128xf32>
    %149 = arith.truncf %147 : vector<8x32xf32> to vector<8x32xbf16>
    %cst_25 = arith.constant dense<0.000000e+00> : vector<8x128xf32>
    %150 = tpu.matmul %149, %7, %cst_25 {dimension_numbers = #tpu.dot_dimension_numbers<[1], [0], [0], [1], [0, 0, 1, 1], [], []>} : vector<8x32xbf16>, vector<32x128xbf16>, vector<8x128xf32> -> vector<8x128xf32>
    %151 = arith.addf %148, %150 : vector<8x128xf32>
    %152 = vector.extract_strided_slice %151 {offsets = [0, 0], sizes = [8, 96], strides = [1, 1]} : vector<8x128xf32> to vector<8x96xf32>
    %153 = arith.negf %152 : vector<8x96xf32>
    %154 = math.exp %153 : vector<8x96xf32>
    %cst_26 = arith.constant 1.000000e+00 : f32
    %155 = vector.broadcast %cst_26 : f32 to vector<8x96xf32>
    %156 = arith.addf %155, %154 : vector<8x96xf32>
    %157 = arith.divf %155, %156 : vector<8x96xf32>
    %158 = vector.extract_strided_slice %151 {offsets = [0, 96], sizes = [8, 32], strides = [1, 1]} : vector<8x128xf32> to vector<8x32xf32>
    %159 = math.tanh %158 : vector<8x32xf32>
    %160 = vector.extract_strided_slice %157 {offsets = [0, 0], sizes = [8, 32], strides = [1, 1]} : vector<8x96xf32> to vector<8x32xf32>
    %161 = vector.extract_strided_slice %157 {offsets = [0, 32], sizes = [8, 32], strides = [1, 1]} : vector<8x96xf32> to vector<8x32xf32>
    %162 = vector.extract_strided_slice %157 {offsets = [0, 64], sizes = [8, 32], strides = [1, 1]} : vector<8x96xf32> to vector<8x32xf32>
    %163 = arith.mulf %161, %145 : vector<8x32xf32>
    %164 = arith.mulf %160, %159 : vector<8x32xf32>
    %165 = arith.addf %163, %164 : vector<8x32xf32>
    %166 = math.tanh %165 : vector<8x32xf32>
    %167 = arith.mulf %162, %166 : vector<8x32xf32>
    %168 = vector.extract_strided_slice %25 {offsets = [56, 0], sizes = [8, 128], strides = [1, 1]} : vector<64x128xf32> to vector<8x128xf32>
    %169 = arith.truncf %167 : vector<8x32xf32> to vector<8x32xbf16>
    %cst_27 = arith.constant dense<0.000000e+00> : vector<8x128xf32>
    %170 = tpu.matmul %169, %7, %cst_27 {dimension_numbers = #tpu.dot_dimension_numbers<[1], [0], [0], [1], [0, 0, 1, 1], [], []>} : vector<8x32xbf16>, vector<32x128xbf16>, vector<8x128xf32> -> vector<8x128xf32>
    %171 = arith.addf %168, %170 : vector<8x128xf32>
    %172 = vector.extract_strided_slice %171 {offsets = [0, 0], sizes = [8, 96], strides = [1, 1]} : vector<8x128xf32> to vector<8x96xf32>
    %173 = arith.negf %172 : vector<8x96xf32>
    %174 = math.exp %173 : vector<8x96xf32>
    %cst_28 = arith.constant 1.000000e+00 : f32
    %175 = vector.broadcast %cst_28 : f32 to vector<8x96xf32>
    %176 = arith.addf %175, %174 : vector<8x96xf32>
    %177 = arith.divf %175, %176 : vector<8x96xf32>
    %178 = vector.extract_strided_slice %171 {offsets = [0, 96], sizes = [8, 32], strides = [1, 1]} : vector<8x128xf32> to vector<8x32xf32>
    %179 = math.tanh %178 : vector<8x32xf32>
    %180 = vector.extract_strided_slice %177 {offsets = [0, 0], sizes = [8, 32], strides = [1, 1]} : vector<8x96xf32> to vector<8x32xf32>
    %181 = vector.extract_strided_slice %177 {offsets = [0, 32], sizes = [8, 32], strides = [1, 1]} : vector<8x96xf32> to vector<8x32xf32>
    %182 = vector.extract_strided_slice %177 {offsets = [0, 64], sizes = [8, 32], strides = [1, 1]} : vector<8x96xf32> to vector<8x32xf32>
    %183 = arith.mulf %181, %165 : vector<8x32xf32>
    %184 = arith.mulf %180, %179 : vector<8x32xf32>
    %185 = arith.addf %183, %184 : vector<8x32xf32>
    %186 = math.tanh %185 : vector<8x32xf32>
    %187 = arith.mulf %182, %186 : vector<8x32xf32>
    %c0_29 = arith.constant 0 : index
    %c0_30 = arith.constant 0 : index
    %188 = vector.load %arg3[%c0_29, %c0_30] : memref<8x32xf32, #tpu.memory_space<vmem>>, vector<8x32xf32>
    tpu.vector_store %arg3[%c0_29, %c0_30], %187 {strides = array<i32>} : memref<8x32xf32, #tpu.memory_space<vmem>>, vector<8x32xf32>,
    return
  }
}

</mosaic_0001>

<llo_original>
// kernel: goal_encoder_forward.1
$region0: #{goal_encoder_forward.1}
  #allocation0 [shape = 'u32[]', space=smem, size = 0x4, offset = 0x4, fixed_abs, tag = 'smem constant byte address 0x4 - core index']
  #allocation1 [shape = 'u32[144,128]{1,0:T(1,128)}', space=vmem, size = 0x12000, scoped, tag = 'internal scratch']
  %s0 = inlined_call_operand.vmem [shape: f32[64,2], index: 0, kind: input, shape index: {}]
  %s1 = inlined_call_operand.vmem [shape: f32[16,32], index: 1, kind: input, shape index: {}]
  %s2 = inlined_call_operand.vmem [shape: f32[72,128], index: 2, kind: input, shape index: {}]
  %s3 = inlined_call_operand.hbm [shape: f32[8,32], index: 3, kind: output, shape index: {}]
  %s4 = sld [smem:[#allocation0]]
  $region22: #{goal_encoder_forward.1} parent=0
    _
  %s6 = ssub.s32 1, %s4
  %s7 = scalar_select 0, %s6, %s4
  $region1: #{goal_encoder_forward.1} parent=0
    #allocation2 [shape = 'u8[4096]{0}', space=vmem, size = 0x1000, scoped, tag = 'output window, operand 0, single buffered']
    #allocation3 [shape = 's32[1]{0}', space=sflag, size = 0x4, scoped, tag = 'scoped memory for goal_encoder_forward.1']
    %8 = vsyncpa [#allocation3], 0
    // Predicated region
    $region2: #{goal_encoder_forward.1} parent=1 // pred_check
      _
    $region3: #{goal_encoder_forward.1} parent=1 // pred_check_branch
      %10 = sbr.rel (0) target = $region5
    $region4: #{goal_encoder_forward.1} parent=1 // pred_region
      _
    $region5: #{goal_encoder_forward.1} parent=1 // pred_fallthru
      _
    // Predicated region
    $region6: #{goal_encoder_forward.1} parent=1 // pred_check
      _
    $region7: #{goal_encoder_forward.1} parent=1 // pred_check_branch
      %12 = sbr.rel (0) target = $region9
    $region8: #{goal_encoder_forward.1} parent=1 // pred_region
      _
    $region9: #{goal_encoder_forward.1} parent=1 // pred_fallthru
      _
    // Predicated region
    $region10: #{goal_encoder_forward.1} parent=1 // pred_check
      _
    $region11: #{goal_encoder_forward.1} parent=1 // pred_check_branch
      %14 = sbr.rel (0) target = $region13
    $region12: #{goal_encoder_forward.1} parent=1 // pred_region
      _
    $region13: #{goal_encoder_forward.1} parent=1 // pred_fallthru
      _
    %v16 = vld [vmem:[%s2] sm:$0x1]
    %v17 = vld [vmem:[%s2 + $0x1] sm:$0x1]
    %v18 = vld [vmem:[%s2 + $0x2] sm:$0x1]
    %v19 = vld [vmem:[%s2 + $0x3] sm:$0x1]
    %v20 = vld [vmem:[%s2 + $0x8] sm:$0xff]
    %v21 = vld [vmem:[%s2 + $0x10] sm:$0xff]
    %v22 = vld [vmem:[%s2 + $0x18] sm:$0xff]
    %v23 = vld [vmem:[%s2 + $0x20] sm:$0xff]
    %v24 = vpack.c.bf16 %v21, %v20
    %v25 = vpack.c.bf16 %v23, %v22
    %v26 = vld [vmem:[%s2 + $0x28] sm:$0xff]
    %v27 = vld [vmem:[%s2 + $0x30] sm:$0xff]
    %v28 = vld [vmem:[%s2 + $0x38] sm:$0xff]
    %v29 = vld [vmem:[%s2 + $0x40] sm:$0xff]
    %v30 = vpack.c.bf16 %v27, %v26
    %v31 = vpack.c.bf16 %v29, %v28
    %v32 = vld [vmem:[%s0] sm:$0xff]
    %v33 = vld [vmem:[%s0 + $0x8] sm:$0xff]
    %v34 = vld [vmem:[%s0 + $0x10] sm:$0xff]
    %v35 = vld [vmem:[%s0 + $0x18] sm:$0xff]
    %v36 = vld [vmem:[%s0 + $0x20] sm:$0xff]
    %v37 = vld [vmem:[%s0 + $0x28] sm:$0xff]
    %v38 = vld [vmem:[%s0 + $0x30] sm:$0xff]
    %v39 = vld [vmem:[%s0 + $0x38] sm:$0xff]
    %41 = vset.pattern.permute.xlu0 0
    %42 = vperm.xlu0 %41, %v32
    %v43 = vpop.permute.xlu0 %42
    %46 = vset.pattern.permute.xlu0 0
    %47 = vperm.xlu0 %46, %v33
    %v48 = vpop.permute.xlu0 %47
    %51 = vset.pattern.permute.xlu0 0
    %52 = vperm.xlu0 %51, %v34
    %v53 = vpop.permute.xlu0 %52
    %56 = vset.pattern.permute.xlu0 0
    %57 = vperm.xlu0 %56, %v35
    %v58 = vpop.permute.xlu0 %57
    %61 = vset.pattern.permute.xlu0 0
    %62 = vperm.xlu0 %61, %v36
    %v63 = vpop.permute.xlu0 %62
    %66 = vset.pattern.permute.xlu0 0
    %67 = vperm.xlu0 %66, %v37
    %v68 = vpop.permute.xlu0 %67
    %71 = vset.pattern.permute.xlu0 0
    %72 = vperm.xlu0 %71, %v38
    %v73 = vpop.permute.xlu0 %72
    %76 = vset.pattern.permute.xlu0 0
    %77 = vperm.xlu0 %76, %v39
    %v78 = vpop.permute.xlu0 %77
    %v80 = vlaneseq
    %v81 = vshrl.u32 %v80, 7
    %v82 = vsub.s32 0, %v81
    %v83 = vrot.slane %v17, %v82
    %v84 = vmul.f32 %v43, %v83
    %v85 = vmul.f32 %v48, %v83
    %v86 = vmul.f32 %v53, %v83
    %v87 = vmul.f32 %v58, %v83
    %v88 = vmul.f32 %v63, %v83
    %v89 = vmul.f32 %v68, %v83
    %v90 = vmul.f32 %v73, %v83
    %v91 = vmul.f32 %v78, %v83
    %92 = vset.pattern.permute.xlu0 1
    %93 = vperm.xlu0 %92, %v32
    %v94 = vpop.permute.xlu0 %93
    %96 = vset.pattern.permute.xlu0 1
    %97 = vperm.xlu0 %96, %v33
    %v98 = vpop.permute.xlu0 %97
    %100 = vset.pattern.permute.xlu0 1
    %101 = vperm.xlu0 %100, %v34
    %v102 = vpop.permute.xlu0 %101
    %104 = vset.pattern.permute.xlu0 1
    %105 = vperm.xlu0 %104, %v35
    %v106 = vpop.permute.xlu0 %105
    %108 = vset.pattern.permute.xlu0 1
    %109 = vperm.xlu0 %108, %v36
    %v110 = vpop.permute.xlu0 %109
    %112 = vset.pattern.permute.xlu0 1
    %113 = vperm.xlu0 %112, %v37
    %v114 = vpop.permute.xlu0 %113
    %116 = vset.pattern.permute.xlu0 1
    %117 = vperm.xlu0 %116, %v38
    %v118 = vpop.permute.xlu0 %117
    %120 = vset.pattern.permute.xlu0 1
    %121 = vperm.xlu0 %120, %v39
    %v122 = vpop.permute.xlu0 %121
    %v124 = vlaneseq
    %v125 = vshrl.u32 %v124, 7
    %v126 = vsub.s32 0, %v125
    %v127 = vrot.slane %v18, %v126
    %v128 = vmul.f32 %v94, %v127
    %v129 = vmul.f32 %v98, %v127
    %v130 = vmul.f32 %v102, %v127
    %v131 = vmul.f32 %v106, %v127
    %v132 = vmul.f32 %v110, %v127
    %v133 = vmul.f32 %v114, %v127
    %v134 = vmul.f32 %v118, %v127
    %v135 = vmul.f32 %v122, %v127
    %v136 = vadd.f32 %v84, %v128
    %v137 = vadd.f32 %v85, %v129
    %v138 = vadd.f32 %v86, %v130
    %v139 = vadd.f32 %v87, %v131
    %v140 = vadd.f32 %v88, %v132
    %v141 = vadd.f32 %v89, %v133
    %v142 = vadd.f32 %v90, %v134
    %v143 = vadd.f32 %v91, %v135
    %v144 = vlaneseq
    %v145 = vshrl.u32 %v144, 7
    %v146 = vsub.s32 0, %v145
    %v147 = vrot.slane %v19, %v146
    %v148 = vadd.f32 %v136, %v147
    %v149 = vadd.f32 %v137, %v147
    %v150 = vadd.f32 %v138, %v147
    %v151 = vadd.f32 %v139, %v147
    %v152 = vadd.f32 %v140, %v147
    %v153 = vadd.f32 %v141, %v147
    %v154 = vadd.f32 %v142, %v147
    %v155 = vadd.f32 %v143, %v147
    %v156 = vmax.f32 %v148, 0.0
    %v157 = vmax.f32 %v149, 0.0
    %v158 = vmax.f32 %v150, 0.0
    %v159 = vmax.f32 %v151, 0.0
    %v160 = vmax.f32 %v152, 0.0
    %v161 = vmax.f32 %v153, 0.0
    %v162 = vmax.f32 %v154, 0.0
    %v163 = vmax.f32 %v155, 0.0
    %v164 = vpack.c.bf16 %v157, %v156
    %v165 = vpack.c.bf16 %v159, %v158
    %v166 = vpack.c.bf16 %v161, %v160
    %v167 = vpack.c.bf16 %v163, %v162
    %v168 = vlaneseq
    %v169 = vshrl.u32 %v168, 7
    %v170 = vsub.s32 0, %v169
    %v171 = vrot.slane %v16, %v170
    %vm172 = vcmask 261120
    %v174 = vsel %vm172, %v164, 0
    %v177 = vsel %vm172, %v165, 0
    %v180 = vsel %vm172, %v166, 0
    %v183 = vsel %vm172, %v167, 0
    %185 = vmatprep.subr.bf16.mxu0 0
    %186 = vmatpush1.bf16.msra.mxu0 0
    %187 = vmatprep.subr.bf16.mxu0 0
    %188 = vmatpush1.bf16.msra.mxu0 0
    %189 = vmatprep.subr.bf16.mxu0 0
    %190 = vmatpush1.bf16.msra.mxu0 0
    %191 = vmatprep.subr.bf16.mxu0 0
    %192 = vmatpush1.bf16.msra.mxu0 0
    %193 = vmatprep.subr.bf16.mxu0 0
    %194 = vmatpush1.bf16.msra.mxu0 0
    %195 = vmatprep.subr.bf16.mxu0 0
    %196 = vmatpush1.bf16.msra.mxu0 0
    %197 = vmatprep.subr.bf16.mxu0 0
    %198 = vmatpush1.bf16.msra.mxu0 %v25
    %199 = vmatprep.subr.bf16.mxu0 0
    %200 = vmatpush1.bf16.msra.mxu0 %v24
    %201 = vmatprep.subr.bf16.mxu0 0
    %202 = vmatpush2.bf16.msra.mxu0 0
    %203 = vmatprep.subr.bf16.mxu0 0
    %204 = vmatpush2.bf16.msra.mxu0 0
    %205 = vmatprep.subr.bf16.mxu0 0
    %206 = vmatpush2.bf16.msra.mxu0 0
    %207 = vmatprep.subr.bf16.mxu0 0
    %208 = vmatpush2.bf16.msra.mxu0 0
    %209 = vmatprep.subr.bf16.mxu0 0
    %210 = vmatpush2.bf16.msra.mxu0 0
    %211 = vmatprep.subr.bf16.mxu0 0
    %212 = vmatpush2.bf16.msra.mxu0 0
    %213 = vmatprep.subr.bf16.mxu0 0
    %214 = vmatpush2.bf16.msra.mxu0 0
    %215 = vmatprep.subr.bf16.mxu0 0
    %216 = vmatpush2.bf16.msra.mxu0 0
    %217 = vmatprep.mubr.bf16.mxu0 0
    %218 = vmatmul.mubr.bf16.gmra.mxu0 %v174
    %v219 = vpop.f32.mrf.mxu0
    %v220 = vadd.f32 %v171, %v219
    %v221 = vpop.f32.mrf.mxu0
    %v222 = vpop.f32.mrf.mxu0
    %v223 = vadd.f32 %v171, %v222
    %v224 = vpop.f32.mrf.mxu0
    %225 = vmatprep.mubr.bf16.mxu0 0
    %226 = vmatmul.mubr.bf16.gmra.mxu0 %v177
    %v227 = vpop.f32.mrf.mxu0
    %v228 = vadd.f32 %v171, %v227
    %v229 = vpop.f32.mrf.mxu0
    %v230 = vpop.f32.mrf.mxu0
    %v231 = vadd.f32 %v171, %v230
    %v232 = vpop.f32.mrf.mxu0
    %233 = vmatprep.mubr.bf16.mxu0 0
    %234 = vmatmul.mubr.bf16.gmra.mxu0 %v180
    %v235 = vpop.f32.mrf.mxu0
    %v236 = vadd.f32 %v171, %v235
    %v237 = vpop.f32.mrf.mxu0
    %v238 = vpop.f32.mrf.mxu0
    %v239 = vadd.f32 %v171, %v238
    %v240 = vpop.f32.mrf.mxu0
    %241 = vmatprep.mubr.bf16.mxu0 0
    %242 = vmatmul.mubr.bf16.gmra.mxu0 %v183
    %v243 = vpop.f32.mrf.mxu0
    %v244 = vadd.f32 %v171, %v243
    %v245 = vpop.f32.mrf.mxu0
    %v246 = vpop.f32.mrf.mxu0
    %v247 = vadd.f32 %v171, %v246
    %v248 = vpop.f32.mrf.mxu0
    %249 = vdwg.mxu0
    %v250 = vld [vmem:[%s1] sm:$0xff]
    %v251 = vld [vmem:[%s1 + $0x8] sm:$0xff]
    %v252 = vpack.c.bf16 %v250, %v250
    %v254 = vsel %vm172, %v252, 0
    %256 = vmatprep.subr.bf16.mxu0 0
    %257 = vmatpush1.bf16.msra.mxu0 0
    %258 = vmatprep.subr.bf16.mxu0 0
    %259 = vmatpush1.bf16.msra.mxu0 0
    %260 = vmatprep.subr.bf16.mxu0 0
    %261 = vmatpush1.bf16.msra.mxu0 0
    %262 = vmatprep.subr.bf16.mxu0 0
    %263 = vmatpush1.bf16.msra.mxu0 0
    %264 = vmatprep.subr.bf16.mxu0 0
    %265 = vmatpush1.bf16.msra.mxu0 0
    %266 = vmatprep.subr.bf16.mxu0 0
    %267 = vmatpush1.bf16.msra.mxu0 0
    %268 = vmatprep.subr.bf16.mxu0 0
    %269 = vmatpush1.bf16.msra.mxu0 %v31
    %270 = vmatprep.subr.bf16.mxu0 0
    %271 = vmatpush1.bf16.msra.mxu0 %v30
    %272 = vmatprep.subr.bf16.mxu0 0
    %273 = vmatpush2.bf16.msra.mxu0 0
    %274 = vmatprep.subr.bf16.mxu0 0
    %275 = vmatpush2.bf16.msra.mxu0 0
    %276 = vmatprep.subr.bf16.mxu0 0
    %277 = vmatpush2.bf16.msra.mxu0 0
    %278 = vmatprep.subr.bf16.mxu0 0
    %279 = vmatpush2.bf16.msra.mxu0 0
    %280 = vmatprep.subr.bf16.mxu0 0
    %281 = vmatpush2.bf16.msra.mxu0 0
    %282 = vmatprep.subr.bf16.mxu0 0
    %283 = vmatpush2.bf16.msra.mxu0 0
    %284 = vmatprep.subr.bf16.mxu0 0
    %285 = vmatpush2.bf16.msra.mxu0 0
    %286 = vmatprep.subr.bf16.mxu0 0
    %287 = vmatpush2.bf16.msra.mxu0 0
    %288 = vmatprep.mubr.bf16.mxu0 0
    %289 = vmatmul.mubr.bf16.gmra.mxu0 %v254
    %v290 = vpop.f32.mrf.mxu0
    %v291 = vadd.f32 0.0, %v290
    %v292 = vpop.f32.mrf.mxu0
    %v293 = vpop.f32.mrf.mxu0
    %v294 = vpop.f32.mrf.mxu0
    %295 = vdwg.mxu0
    %v296 = vadd.f32 %v220, %v291
    %v297 = vxor.u32 %v296, 2147483648
    %v298 = vmul.f32 %v297, 1.442695
    %v299 = vpow.pop %v298
    %v300 = vadd.f32 %v299, 1.0
    %v301 = vrcp.pop %v300
    %v302 = vmul.f32 1.0, %v301
    %v303 = vtanh.pop %v296
    %305 = vrot.lane.b32.xlu0 %v251, 32
    %v306 = vpop.permute.xlu0 %305
    %v308 = vmul.f32 %v302, %v306
    %310 = vrot.lane.b32.xlu0 %v303, 32
    %v311 = vpop.permute.xlu0 %310
    %v313 = vmul.f32 %v302, %v311
    %315 = vrot.lane.b32.xlu0 %v313, 32
    %v316 = vpop.permute.xlu0 %315
    %v318 = vadd.f32 %v308, %v316
    %v319 = vtanh.pop %v318
    %321 = vrot.lane.b32.xlu0 %v319, 32
    %v322 = vpop.permute.xlu0 %321
    %v324 = vmul.f32 %v302, %v322
    %v325 = vpack.c.bf16 %v324, %v324
    %327 = vrot.lane.b32.xlu0 %v325, 64
    %v328 = vpop.permute.xlu0 %327
    %v330 = vsel %vm172, %v328, 0
    %332 = vmatprep.subr.bf16.mxu0 0
    %333 = vmatpush1.bf16.msra.mxu0 0
    %334 = vmatprep.subr.bf16.mxu0 0
    %335 = vmatpush1.bf16.msra.mxu0 0
    %336 = vmatprep.subr.bf16.mxu0 0
    %337 = vmatpush1.bf16.msra.mxu0 0
    %338 = vmatprep.subr.bf16.mxu0 0
    %339 = vmatpush1.bf16.msra.mxu0 0
    %340 = vmatprep.subr.bf16.mxu0 0
    %341 = vmatpush1.bf16.msra.mxu0 0
    %342 = vmatprep.subr.bf16.mxu0 0
    %343 = vmatpush1.bf16.msra.mxu0 0
    %344 = vmatprep.subr.bf16.mxu0 0
    %345 = vmatpush1.bf16.msra.mxu0 %v31
    %346 = vmatprep.subr.bf16.mxu0 0
    %347 = vmatpush1.bf16.msra.mxu0 %v30
    %348 = vmatprep.subr.bf16.mxu0 0
    %349 = vmatpush2.bf16.msra.mxu0 0
    %350 = vmatprep.subr.bf16.mxu0 0
    %351 = vmatpush2.bf16.msra.mxu0 0
    %352 = vmatprep.subr.bf16.mxu0 0
    %353 = vmatpush2.bf16.msra.mxu0 0
    %354 = vmatprep.subr.bf16.mxu0 0
    %355 = vmatpush2.bf16.msra.mxu0 0
    %356 = vmatprep.subr.bf16.mxu0 0
    %357 = vmatpush2.bf16.msra.mxu0 0
    %358 = vmatprep.subr.bf16.mxu0 0
    %359 = vmatpush2.bf16.msra.mxu0 0
    %360 = vmatprep.subr.bf16.mxu0 0
    %361 = vmatpush2.bf16.msra.mxu0 0
    %362 = vmatprep.subr.bf16.mxu0 0
    %363 = vmatpush2.bf16.msra.mxu0 0
    %364 = vmatprep.mubr.bf16.mxu0 0
    %365 = vmatmul.mubr.bf16.gmra.mxu0 %v330
    %v366 = vpop.f32.mrf.mxu0
    %v367 = vadd.f32 0.0, %v366
    %v368 = vpop.f32.mrf.mxu0
    %v369 = vpop.f32.mrf.mxu0
    %v370 = vpop.f32.mrf.mxu0
    %371 = vdwg.mxu0
    %v372 = vadd.f32 %v223, %v367
    %v373 = vxor.u32 %v372, 2147483648
    %v374 = vmul.f32 %v373, 1.442695
    %v375 = vpow.pop %v374
    %v376 = vadd.f32 %v375, 1.0
    %v377 = vrcp.pop %v376
    %v378 = vmul.f32 1.0, %v377
    %v379 = vtanh.pop %v372
    %v380 = vmul.f32 %v378, %v318
    %382 = vrot.lane.b32.xlu0 %v379, 32
    %v383 = vpop.permute.xlu0 %382
    %v385 = vmul.f32 %v378, %v383
    %387 = vrot.lane.b32.xlu0 %v385, 32
    %v388 = vpop.permute.xlu0 %387
    %v390 = vadd.f32 %v380, %v388
    %v391 = vtanh.pop %v390
    %393 = vrot.lane.b32.xlu0 %v391, 32
    %v394 = vpop.permute.xlu0 %393
    %v396 = vmul.f32 %v378, %v394
    %v397 = vpack.c.bf16 %v396, %v396
    %399 = vrot.lane.b32.xlu0 %v397, 64
    %v400 = vpop.permute.xlu0 %399
    %v402 = vsel %vm172, %v400, 0
    %404 = vmatprep.subr.bf16.mxu0 0
    %405 = vmatpush1.bf16.msra.mxu0 0
    %406 = vmatprep.subr.bf16.mxu0 0
    %407 = vmatpush1.bf16.msra.mxu0 0
    %408 = vmatprep.subr.bf16.mxu0 0
    %409 = vmatpush1.bf16.msra.mxu0 0
    %410 = vmatprep.subr.bf16.mxu0 0
    %411 = vmatpush1.bf16.msra.mxu0 0
    %412 = vmatprep.subr.bf16.mxu0 0
    %413 = vmatpush1.bf16.msra.mxu0 0
    %414 = vmatprep.subr.bf16.mxu0 0
    %415 = vmatpush1.bf16.msra.mxu0 0
    %416 = vmatprep.subr.bf16.mxu0 0
    %417 = vmatpush1.bf16.msra.mxu0 %v31
    %418 = vmatprep.subr.bf16.mxu0 0
    %419 = vmatpush1.bf16.msra.mxu0 %v30
    %420 = vmatprep.subr.bf16.mxu0 0
    %421 = vmatpush2.bf16.msra.mxu0 0
    %422 = vmatprep.subr.bf16.mxu0 0
    %423 = vmatpush2.bf16.msra.mxu0 0
    %424 = vmatprep.subr.bf16.mxu0 0
    %425 = vmatpush2.bf16.msra.mxu0 0
    %426 = vmatprep.subr.bf16.mxu0 0
    %427 = vmatpush2.bf16.msra.mxu0 0
    %428 = vmatprep.subr.bf16.mxu0 0
    %429 = vmatpush2.bf16.msra.mxu0 0
    %430 = vmatprep.subr.bf16.mxu0 0
    %431 = vmatpush2.bf16.msra.mxu0 0
    %432 = vmatprep.subr.bf16.mxu0 0
    %433 = vmatpush2.bf16.msra.mxu0 0
    %434 = vmatprep.subr.bf16.mxu0 0
    %435 = vmatpush2.bf16.msra.mxu0 0
    %436 = vmatprep.mubr.bf16.mxu0 0
    %437 = vmatmul.mubr.bf16.gmra.mxu0 %v402
    %v438 = vpop.f32.mrf.mxu0
    %v439 = vadd.f32 0.0, %v438
    %v440 = vpop.f32.mrf.mxu0
    %v441 = vpop.f32.mrf.mxu0
    %v442 = vpop.f32.mrf.mxu0
    %443 = vdwg.mxu0
    %v444 = vadd.f32 %v228, %v439
    %v445 = vxor.u32 %v444, 2147483648
    %v446 = vmul.f32 %v445, 1.442695
    %v447 = vpow.pop %v446
    %v448 = vadd.f32 %v447, 1.0
    %v449 = vrcp.pop %v448
    %v450 = vmul.f32 1.0, %v449
    %v451 = vtanh.pop %v444
    %v452 = vmul.f32 %v450, %v390
    %454 = vrot.lane.b32.xlu0 %v451, 32
    %v455 = vpop.permute.xlu0 %454
    %v457 = vmul.f32 %v450, %v455
    %459 = vrot.lane.b32.xlu0 %v457, 32
    %v460 = vpop.permute.xlu0 %459
    %v462 = vadd.f32 %v452, %v460
    %v463 = vtanh.pop %v462
    %465 = vrot.lane.b32.xlu0 %v463, 32
    %v466 = vpop.permute.xlu0 %465
    %v468 = vmul.f32 %v450, %v466
    %v469 = vpack.c.bf16 %v468, %v468
    %471 = vrot.lane.b32.xlu0 %v469, 64
    %v472 = vpop.permute.xlu0 %471
    %v474 = vsel %vm172, %v472, 0
    %476 = vmatprep.subr.bf16.mxu0 0
    %477 = vmatpush1.bf16.msra.mxu0 0
    %478 = vmatprep.subr.bf16.mxu0 0
    %479 = vmatpush1.bf16.msra.mxu0 0
    %480 = vmatprep.subr.bf16.mxu0 0
    %481 = vmatpush1.bf16.msra.mxu0 0
    %482 = vmatprep.subr.bf16.mxu0 0
    %483 = vmatpush1.bf16.msra.mxu0 0
    %484 = vmatprep.subr.bf16.mxu0 0
    %485 = vmatpush1.bf16.msra.mxu0 0
    %486 = vmatprep.subr.bf16.mxu0 0
    %487 = vmatpush1.bf16.msra.mxu0 0
    %488 = vmatprep.subr.bf16.mxu0 0
    %489 = vmatpush1.bf16.msra.mxu0 %v31
    %490 = vmatprep.subr.bf16.mxu0 0
    %491 = vmatpush1.bf16.msra.mxu0 %v30
    %492 = vmatprep.subr.bf16.mxu0 0
    %493 = vmatpush2.bf16.msra.mxu0 0
    %494 = vmatprep.subr.bf16.mxu0 0
    %495 = vmatpush2.bf16.msra.mxu0 0
    %496 = vmatprep.subr.bf16.mxu0 0
    %497 = vmatpush2.bf16.msra.mxu0 0
    %498 = vmatprep.subr.bf16.mxu0 0
    %499 = vmatpush2.bf16.msra.mxu0 0
    %500 = vmatprep.subr.bf16.mxu0 0
    %501 = vmatpush2.bf16.msra.mxu0 0
    %502 = vmatprep.subr.bf16.mxu0 0
    %503 = vmatpush2.bf16.msra.mxu0 0
    %504 = vmatprep.subr.bf16.mxu0 0
    %505 = vmatpush2.bf16.msra.mxu0 0
    %506 = vmatprep.subr.bf16.mxu0 0
    %507 = vmatpush2.bf16.msra.mxu0 0
    %508 = vmatprep.mubr.bf16.mxu0 0
    %509 = vmatmul.mubr.bf16.gmra.mxu0 %v474
    %v510 = vpop.f32.mrf.mxu0
    %v511 = vadd.f32 0.0, %v510
    %v512 = vpop.f32.mrf.mxu0
    %v513 = vpop.f32.mrf.mxu0
    %v514 = vpop.f32.mrf.mxu0
    %515 = vdwg.mxu0
    %v516 = vadd.f32 %v231, %v511
    %v517 = vxor.u32 %v516, 2147483648
    %v518 = vmul.f32 %v517, 1.442695
    %v519 = vpow.pop %v518
    %v520 = vadd.f32 %v519, 1.0
    %v521 = vrcp.pop %v520
    %v522 = vmul.f32 1.0, %v521
    %v523 = vtanh.pop %v516
    %v524 = vmul.f32 %v522, %v462
    %526 = vrot.lane.b32.xlu0 %v523, 32
    %v527 = vpop.permute.xlu0 %526
    %v529 = vmul.f32 %v522, %v527
    %531 = vrot.lane.b32.xlu0 %v529, 32
    %v532 = vpop.permute.xlu0 %531
    %v534 = vadd.f32 %v524, %v532
    %v535 = vtanh.pop %v534
    %537 = vrot.lane.b32.xlu0 %v535, 32
    %v538 = vpop.permute.xlu0 %537
    %v540 = vmul.f32 %v522, %v538
    %v541 = vpack.c.bf16 %v540, %v540
    %543 = vrot.lane.b32.xlu0 %v541, 64
    %v544 = vpop.permute.xlu0 %543
    %v546 = vsel %vm172, %v544, 0
    %548 = vmatprep.subr.bf16.mxu0 0
    %549 = vmatpush1.bf16.msra.mxu0 0
    %550 = vmatprep.subr.bf16.mxu0 0
    %551 = vmatpush1.bf16.msra.mxu0 0
    %552 = vmatprep.subr.bf16.mxu0 0
    %553 = vmatpush1.bf16.msra.mxu0 0
    %554 = vmatprep.subr.bf16.mxu0 0
    %555 = vmatpush1.bf16.msra.mxu0 0
    %556 = vmatprep.subr.bf16.mxu0 0
    %557 = vmatpush1.bf16.msra.mxu0 0
    %558 = vmatprep.subr.bf16.mxu0 0
    %559 = vmatpush1.bf16.msra.mxu0 0
    %560 = vmatprep.subr.bf16.mxu0 0
    %561 = vmatpush1.bf16.msra.mxu0 %v31
    %562 = vmatprep.subr.bf16.mxu0 0
    %563 = vmatpush1.bf16.msra.mxu0 %v30
    %564 = vmatprep.subr.bf16.mxu0 0
    %565 = vmatpush2.bf16.msra.mxu0 0
    %566 = vmatprep.subr.bf16.mxu0 0
    %567 = vmatpush2.bf16.msra.mxu0 0
    %568 = vmatprep.subr.bf16.mxu0 0
    %569 = vmatpush2.bf16.msra.mxu0 0
    %570 = vmatprep.subr.bf16.mxu0 0
    %571 = vmatpush2.bf16.msra.mxu0 0
    %572 = vmatprep.subr.bf16.mxu0 0
    %573 = vmatpush2.bf16.msra.mxu0 0
    %574 = vmatprep.subr.bf16.mxu0 0
    %575 = vmatpush2.bf16.msra.mxu0 0
    %576 = vmatprep.subr.bf16.mxu0 0
    %577 = vmatpush2.bf16.msra.mxu0 0
    %578 = vmatprep.subr.bf16.mxu0 0
    %579 = vmatpush2.bf16.msra.mxu0 0
    %580 = vmatprep.mubr.bf16.mxu0 0
    %581 = vmatmul.mubr.bf16.gmra.mxu0 %v546
    %v582 = vpop.f32.mrf.mxu0
    %v583 = vadd.f32 0.0, %v582
    %v584 = vpop.f32.mrf.mxu0
    %v585 = vpop.f32.mrf.mxu0
    %v586 = vpop.f32.mrf.mxu0
    %587 = vdwg.mxu0
    %v588 = vadd.f32 %v236, %v583
    %v589 = vxor.u32 %v588, 2147483648
    %v590 = vmul.f32 %v589, 1.442695
    %v591 = vpow.pop %v590
    %v592 = vadd.f32 %v591, 1.0
    %v593 = vrcp.pop %v592
    %v594 = vmul.f32 1.0, %v593
    %v595 = vtanh.pop %v588
    %v596 = vmul.f32 %v594, %v534
    %598 = vrot.lane.b32.xlu0 %v595, 32
    %v599 = vpop.permute.xlu0 %598
    %v601 = vmul.f32 %v594, %v599
    %603 = vrot.lane.b32.xlu0 %v601, 32
    %v604 = vpop.permute.xlu0 %603
    %v606 = vadd.f32 %v596, %v604
    %v607 = vtanh.pop %v606
    %609 = vrot.lane.b32.xlu0 %v607, 32
    %v610 = vpop.permute.xlu0 %609
    %v612 = vmul.f32 %v594, %v610
    %v613 = vpack.c.bf16 %v612, %v612
    %615 = vrot.lane.b32.xlu0 %v613, 64
    %v616 = vpop.permute.xlu0 %615
    %v618 = vsel %vm172, %v616, 0
    %620 = vmatprep.subr.bf16.mxu0 0
    %621 = vmatpush1.bf16.msra.mxu0 0
    %622 = vmatprep.subr.bf16.mxu0 0
    %623 = vmatpush1.bf16.msra.mxu0 0
    %624 = vmatprep.subr.bf16.mxu0 0
    %625 = vmatpush1.bf16.msra.mxu0 0
    %626 = vmatprep.subr.bf16.mxu0 0
    %627 = vmatpush1.bf16.msra.mxu0 0
    %628 = vmatprep.subr.bf16.mxu0 0
    %629 = vmatpush1.bf16.msra.mxu0 0
    %630 = vmatprep.subr.bf16.mxu0 0
    %631 = vmatpush1.bf16.msra.mxu0 0
    %632 = vmatprep.subr.bf16.mxu0 0
    %633 = vmatpush1.bf16.msra.mxu0 %v31
    %634 = vmatprep.subr.bf16.mxu0 0
    %635 = vmatpush1.bf16.msra.mxu0 %v30
    %636 = vmatprep.subr.bf16.mxu0 0
    %637 = vmatpush2.bf16.msra.mxu0 0
    %638 = vmatprep.subr.bf16.mxu0 0
    %639 = vmatpush2.bf16.msra.mxu0 0
    %640 = vmatprep.subr.bf16.mxu0 0
    %641 = vmatpush2.bf16.msra.mxu0 0
    %642 = vmatprep.subr.bf16.mxu0 0
    %643 = vmatpush2.bf16.msra.mxu0 0
    %644 = vmatprep.subr.bf16.mxu0 0
    %645 = vmatpush2.bf16.msra.mxu0 0
    %646 = vmatprep.subr.bf16.mxu0 0
    %647 = vmatpush2.bf16.msra.mxu0 0
    %648 = vmatprep.subr.bf16.mxu0 0
    %649 = vmatpush2.bf16.msra.mxu0 0
    %650 = vmatprep.subr.bf16.mxu0 0
    %651 = vmatpush2.bf16.msra.mxu0 0
    %652 = vmatprep.mubr.bf16.mxu0 0
    %653 = vmatmul.mubr.bf16.gmra.mxu0 %v618
    %v654 = vpop.f32.mrf.mxu0
    %v655 = vadd.f32 0.0, %v654
    %v656 = vpop.f32.mrf.mxu0
    %v657 = vpop.f32.mrf.mxu0
    %v658 = vpop.f32.mrf.mxu0
    %659 = vdwg.mxu0
    %v660 = vadd.f32 %v239, %v655
    %v661 = vxor.u32 %v660, 2147483648
    %v662 = vmul.f32 %v661, 1.442695
    %v663 = vpow.pop %v662
    %v664 = vadd.f32 %v663, 1.0
    %v665 = vrcp.pop %v664
    %v666 = vmul.f32 1.0, %v665
    %v667 = vtanh.pop %v660
    %v668 = vmul.f32 %v666, %v606
    %670 = vrot.lane.b32.xlu0 %v667, 32
    %v671 = vpop.permute.xlu0 %670
    %v673 = vmul.f32 %v666, %v671
    %675 = vrot.lane.b32.xlu0 %v673, 32
    %v676 = vpop.permute.xlu0 %675
    %v678 = vadd.f32 %v668, %v676
    %v679 = vtanh.pop %v678
    %681 = vrot.lane.b32.xlu0 %v679, 32
    %v682 = vpop.permute.xlu0 %681
    %v684 = vmul.f32 %v666, %v682
    %v685 = vpack.c.bf16 %v684, %v684
    %687 = vrot.lane.b32.xlu0 %v685, 64
    %v688 = vpop.permute.xlu0 %687
    %v690 = vsel %vm172, %v688, 0
    %692 = vmatprep.subr.bf16.mxu0 0
    %693 = vmatpush1.bf16.msra.mxu0 0
    %694 = vmatprep.subr.bf16.mxu0 0
    %695 = vmatpush1.bf16.msra.mxu0 0
    %696 = vmatprep.subr.bf16.mxu0 0
    %697 = vmatpush1.bf16.msra.mxu0 0
    %698 = vmatprep.subr.bf16.mxu0 0
    %699 = vmatpush1.bf16.msra.mxu0 0
    %700 = vmatprep.subr.bf16.mxu0 0
    %701 = vmatpush1.bf16.msra.mxu0 0
    %702 = vmatprep.subr.bf16.mxu0 0
    %703 = vmatpush1.bf16.msra.mxu0 0
    %704 = vmatprep.subr.bf16.mxu0 0
    %705 = vmatpush1.bf16.msra.mxu0 %v31
    %706 = vmatprep.subr.bf16.mxu0 0
    %707 = vmatpush1.bf16.msra.mxu0 %v30
    %708 = vmatprep.subr.bf16.mxu0 0
    %709 = vmatpush2.bf16.msra.mxu0 0
    %710 = vmatprep.subr.bf16.mxu0 0
    %711 = vmatpush2.bf16.msra.mxu0 0
    %712 = vmatprep.subr.bf16.mxu0 0
    %713 = vmatpush2.bf16.msra.mxu0 0
    %714 = vmatprep.subr.bf16.mxu0 0
    %715 = vmatpush2.bf16.msra.mxu0 0
    %716 = vmatprep.subr.bf16.mxu0 0
    %717 = vmatpush2.bf16.msra.mxu0 0
    %718 = vmatprep.subr.bf16.mxu0 0
    %719 = vmatpush2.bf16.msra.mxu0 0
    %720 = vmatprep.subr.bf16.mxu0 0
    %721 = vmatpush2.bf16.msra.mxu0 0
    %722 = vmatprep.subr.bf16.mxu0 0
    %723 = vmatpush2.bf16.msra.mxu0 0
    %724 = vmatprep.mubr.bf16.mxu0 0
    %725 = vmatmul.mubr.bf16.gmra.mxu0 %v690
    %v726 = vpop.f32.mrf.mxu0
    %v727 = vadd.f32 0.0, %v726
    %v728 = vpop.f32.mrf.mxu0
    %v729 = vpop.f32.mrf.mxu0
    %v730 = vpop.f32.mrf.mxu0
    %731 = vdwg.mxu0
    %v732 = vadd.f32 %v244, %v727
    %v733 = vxor.u32 %v732, 2147483648
    %v734 = vmul.f32 %v733, 1.442695
    %v735 = vpow.pop %v734
    %v736 = vadd.f32 %v735, 1.0
    %v737 = vrcp.pop %v736
    %v738 = vmul.f32 1.0, %v737
    %v739 = vtanh.pop %v732
    %v740 = vmul.f32 %v738, %v678
    %742 = vrot.lane.b32.xlu0 %v739, 32
    %v743 = vpop.permute.xlu0 %742
    %v745 = vmul.f32 %v738, %v743
    %747 = vrot.lane.b32.xlu0 %v745, 32
    %v748 = vpop.permute.xlu0 %747
    %v750 = vadd.f32 %v740, %v748
    %v751 = vtanh.pop %v750
    %753 = vrot.lane.b32.xlu0 %v751, 32
    %v754 = vpop.permute.xlu0 %753
    %v756 = vmul.f32 %v738, %v754
    %v757 = vpack.c.bf16 %v756, %v756
    %759 = vrot.lane.b32.xlu0 %v757, 64
    %v760 = vpop.permute.xlu0 %759
    %v762 = vsel %vm172, %v760, 0
    %764 = vmatprep.subr.bf16.mxu0 0
    %765 = vmatpush1.bf16.msra.mxu0 0
    %766 = vmatprep.subr.bf16.mxu0 0
    %767 = vmatpush1.bf16.msra.mxu0 0
    %768 = vmatprep.subr.bf16.mxu0 0
    %769 = vmatpush1.bf16.msra.mxu0 0
    %770 = vmatprep.subr.bf16.mxu0 0
    %771 = vmatpush1.bf16.msra.mxu0 0
    %772 = vmatprep.subr.bf16.mxu0 0
    %773 = vmatpush1.bf16.msra.mxu0 0
    %774 = vmatprep.subr.bf16.mxu0 0
    %775 = vmatpush1.bf16.msra.mxu0 0
    %776 = vmatprep.subr.bf16.mxu0 0
    %777 = vmatpush1.bf16.msra.mxu0 %v31
    %778 = vmatprep.subr.bf16.mxu0 0
    %779 = vmatpush1.bf16.msra.mxu0 %v30
    %780 = vmatprep.subr.bf16.mxu0 0
    %781 = vmatpush2.bf16.msra.mxu0 0
    %782 = vmatprep.subr.bf16.mxu0 0
    %783 = vmatpush2.bf16.msra.mxu0 0
    %784 = vmatprep.subr.bf16.mxu0 0
    %785 = vmatpush2.bf16.msra.mxu0 0
    %786 = vmatprep.subr.bf16.mxu0 0
    %787 = vmatpush2.bf16.msra.mxu0 0
    %788 = vmatprep.subr.bf16.mxu0 0
    %789 = vmatpush2.bf16.msra.mxu0 0
    %790 = vmatprep.subr.bf16.mxu0 0
    %791 = vmatpush2.bf16.msra.mxu0 0
    %792 = vmatprep.subr.bf16.mxu0 0
    %793 = vmatpush2.bf16.msra.mxu0 0
    %794 = vmatprep.subr.bf16.mxu0 0
    %795 = vmatpush2.bf16.msra.mxu0 0
    %796 = vmatprep.mubr.bf16.mxu0 0
    %797 = vmatmul.mubr.bf16.gmra.mxu0 %v762
    %v798 = vpop.f32.mrf.mxu0
    %v799 = vadd.f32 0.0, %v798
    %v800 = vpop.f32.mrf.mxu0
    %v801 = vpop.f32.mrf.mxu0
    %v802 = vpop.f32.mrf.mxu0
    %803 = vdwg.mxu0
    %v804 = vadd.f32 %v247, %v799
    %v805 = vxor.u32 %v804, 2147483648
    %v806 = vmul.f32 %v805, 1.442695
    %v807 = vpow.pop %v806
    %v808 = vadd.f32 %v807, 1.0
    %v809 = vrcp.pop %v808
    %v810 = vmul.f32 1.0, %v809
    %v811 = vtanh.pop %v804
    %v812 = vmul.f32 %v810, %v750
    %814 = vrot.lane.b32.xlu0 %v811, 32
    %v815 = vpop.permute.xlu0 %814
    %v817 = vmul.f32 %v810, %v815
    %819 = vrot.lane.b32.xlu0 %v817, 32
    %v820 = vpop.permute.xlu0 %819
    %v822 = vadd.f32 %v812, %v820
    %v823 = vtanh.pop %v822
    %825 = vrot.lane.b32.xlu0 %v823, 32
    %v826 = vpop.permute.xlu0 %825
    %v828 = vmul.f32 %v810, %v826
    %830 = vrot.lane.b32.xlu0 %v828, 64
    %v831 = vpop.permute.xlu0 %830
    %833 = vst.msk [vmem:[#allocation2] sm:$0xff] %vm172, %v831
    // Predicated region
    $region14: #{goal_encoder_forward.1} parent=1 // pred_check
      _
    $region15: #{goal_encoder_forward.1} parent=1 // pred_check_branch
      %835 = sbr.rel (0) target = $region17
    $region16: #{goal_encoder_forward.1} parent=1 // pred_region
      %s837 = ssub.s32 128, 128
      %838 = vsyncadd [#allocation3], %s837
      %s840 = sshll.u32 [#allocation2], 4
      %s841 = int_to_ptr.vmem [resolvable:$true] %s840
      %843 = dma.vmem_to_hbm [thread:$0]  %s841, 128, %s3, [#allocation3]
    $region17: #{goal_encoder_forward.1} parent=1 // pred_fallthru
      _
    // Predicated region
    $region18: #{goal_encoder_forward.1} parent=1 // pred_check
      _
    $region19: #{goal_encoder_forward.1} parent=1 // pred_check_branch
      %845 = sbr.rel (0) target = $region21
    $region20: #{goal_encoder_forward.1} parent=1 // pred_region
      %846 = dma.done [#allocation3], 128
    $region21: #{goal_encoder_forward.1} parent=1 // pred_fallthru
      _
    %847 = vsyncpa [#allocation3], 1

</llo_original>
